<compile_context>
chip_gen: v5e
topology: v5e:2x2
jax: 0.10.0
libtpu: 0.0.40
codegen_flags: <defaults>
</compile_context>

<pallas_src>
import jax
import jax.numpy as jnp
from jax.experimental import pallas as pl
from jax.experimental.pallas import tpu as pltpu

LANES = 128
_IN_FEATURES = 4
_NUM_ACTIONS = 2          # actor log-probs live in output cols 0:2
_CRITIC_COL = 2           # critic value is packed into output col 2

# bf16 slab layout (all block starts are multiples of the (16, 128) bf16 tile).
_HEAD_ROWS = 16           # rows 0:4 = W1, rows 8:12 = bias rows, rest zero
_B1_ROW, _B2_ROW, _BF_ROW, _BC_ROW = 8, 9, 10, 11
_W2_ROW = 16              # (25, 50) weight inside a 128-row block
_WF_ROW = 144             # fused [wa | w3]: (50, 2) in cols 0:2, (50, 25) in cols 2:27
_WC_ROW = 272             # wc (25, 1) shifted to rows +2:+27, col _CRITIC_COL
_SLAB_ROWS = 400


def _actor_critic_kernel(x_ref, p_ref, out_ref):
    x = x_ref[...]                                        # (B, 4) f32, natural shape
    b = x.shape[0]

    # One tile-aligned load holds the layer-1 weight rows and all bias rows.
    head = p_ref[0:_HEAD_ROWS, :]                         # (16, 128) bf16
    w1 = head[0:_IN_FEATURES, :].astype(jnp.float32)      # (4, 128)
    b1 = head[_B1_ROW:_B1_ROW + 1, :].astype(jnp.float32)
    b2 = head[_B2_ROW:_B2_ROW + 1, :].astype(jnp.float32)
    bf = head[_BF_ROW:_BF_ROW + 1, :].astype(jnp.float32)
    bc = head[_BC_ROW:_BC_ROW + 1, :].astype(jnp.float32)

    w2 = p_ref[_W2_ROW:_W2_ROW + LANES, :]                # (128, 128) bf16
    wf = p_ref[_WF_ROW:_WF_ROW + LANES, :]                # fused actor/l3 block
    wc = p_ref[_WC_ROW:_WC_ROW + LANES, :]                # critic block (rows 2:27)

    # --- layer 1 on the VPU (fan-in is only 4): y = relu(x @ W1 + b1) -----------
    y = b1
    for k in range(_IN_FEATURES):
        y = y + x[:, k:k + 1] * w1[k:k + 1, :]            # (B,1)*(1,128) broadcast
    y = jnp.maximum(y, 0.0)                               # (B, 128); cols 25: are 0

    # --- layer 2 (MXU, single-pass bf16, f32 accumulation) ----------------------
    y = jnp.maximum(
        jnp.dot(y.astype(jnp.bfloat16), w2, preferred_element_type=jnp.float32) + b2,
        0.0)                                              # (B, 128); cols 50: are 0

    # --- fused actor_lin1 + l3 matmul -------------------------------------------
    z = jnp.dot(y.astype(jnp.bfloat16), wf, preferred_element_type=jnp.float32) + bf
    col = jax.lax.broadcasted_iota(jnp.int32, (b, LANES), 1)
    # ReLU only on the l3 columns (>= 2); actor logits (cols 0:2) stay raw.
    zr = jnp.where(col < _NUM_ACTIONS, z, jnp.maximum(z, 0.0))

    # --- actor head: log_softmax over dim=0 (batch axis), as in the module ------
    m = jnp.max(zr, axis=0, keepdims=True)                # (1, 128)  (XLU)
    zc = zr - m
    lse = jnp.log(jnp.sum(jnp.exp(zc), axis=0, keepdims=True))
    actor = zc - lse                                      # cols 0:2 valid

    # --- critic head: wc block reads l3 activations from cols 2:27 --------------
    critic = jnp.dot(zr.astype(jnp.bfloat16), wc,
                     preferred_element_type=jnp.float32) + bc   # col 2 valid

    # --- fused lane-dense output: cols 0:2 actor log-probs, col 2 critic --------
    out_ref[...] = jnp.where(col < _NUM_ACTIONS, actor, critic)


def pack_params(params):
    """Pack the 10 (pre-transposed) Linear params into one (400, 128) bf16 slab."""
    w1, b1, w2, b2, wa, ba, w3, b3, wc, bc = params
    slab = jnp.zeros((_SLAB_ROWS, LANES), jnp.float32)

    # Head block: layer-1 weight rows + all bias rows.
    slab = slab.at[0:_IN_FEATURES, 0:w1.shape[1]].set(w1)
    slab = slab.at[_B1_ROW, 0:b1.shape[1]].set(b1[0])
    slab = slab.at[_B2_ROW, 0:b2.shape[1]].set(b2[0])
    slab = slab.at[_BF_ROW, 0:_NUM_ACTIONS].set(ba[0])                       # actor bias
    slab = slab.at[_BF_ROW, _NUM_ACTIONS:_NUM_ACTIONS + b3.shape[1]].set(b3[0])  # l3 bias
    slab = slab.at[_BC_ROW, _CRITIC_COL].set(bc[0, 0])                       # critic bias

    # l2 weight block.
    slab = slab.at[_W2_ROW:_W2_ROW + w2.shape[0], 0:w2.shape[1]].set(w2)
    # Fused [actor_lin1 | l3] block: wa -> cols 0:2, w3 -> cols 2:27.
    slab = slab.at[_WF_ROW:_WF_ROW + wa.shape[0], 0:_NUM_ACTIONS].set(wa)
    slab = slab.at[_WF_ROW:_WF_ROW + w3.shape[0],
                   _NUM_ACTIONS:_NUM_ACTIONS + w3.shape[1]].set(w3)
    # critic_lin1 block, shifted down 2 rows so it contracts against cols 2:27.
    slab = slab.at[_WC_ROW + 2:_WC_ROW + 2 + wc.shape[0],
                   _CRITIC_COL:_CRITIC_COL + 1].set(wc)
    return slab.astype(jnp.bfloat16)


@jax.jit
def actor_critic_forward(x, packed_params):
    B = x.shape[0]
    vmem = pl.BlockSpec(memory_space=pltpu.MemorySpace.VMEM)
    out = pl.pallas_call(
        _actor_critic_kernel,
        out_shape=jax.ShapeDtypeStruct((B, LANES), jnp.float32),
        in_specs=[vmem, vmem],          # 2 input DMAs: x (natural shape) + bf16 slab
        out_specs=vmem,                 # 1 lane-dense output DMA
    )(x, packed_params)
    # Downstream code could consume the fused (B, 128) slab directly; slicing here
    # keeps the (actor, critic) API and fuses into the same jit executable.
    actor = out[:, 0:_NUM_ACTIONS]
    critic = out[:, _CRITIC_COL:_CRITIC_COL + 1]
    return actor, critic


def init_params(key):
    """PyTorch-style uniform(-1/sqrt(fan_in)) init. Weights as (in, out), biases (1, out)."""
    dims = [
        (4, 25),    # l1
        (25, 50),   # l2
        (50, 2),    # actor_lin1
        (50, 25),   # l3
        (25, 1),    # critic_lin1
    ]
    params = []
    for fan_in, fan_out in dims:
        key, kw, kb = jax.random.split(key, 3)
        bound = 1.0 / jnp.sqrt(jnp.float32(fan_in))
        w = jax.random.uniform(kw, (fan_in, fan_out), jnp.float32, -bound, bound)
        b = jax.random.uniform(kb, (1, fan_out), jnp.float32, -bound, bound)
        params.extend([w, b])
    return params


def reference_forward(x, params):
    """Pure-JAX f32 reference mirroring the PyTorch forward exactly."""
    w1, b1, w2, b2, wa, ba, w3, b3, wc, bc = params
    y = jnp.maximum(x @ w1 + b1, 0.0)
    y = jnp.maximum(y @ w2 + b2, 0.0)
    actor = jax.nn.log_softmax(y @ wa + ba, axis=0)   # dim=0, as in the module
    c = jnp.maximum(y @ w3 + b3, 0.0)
    critic = c @ wc + bc
    return actor, critic


if __name__ == "__main__":
    key = jax.random.PRNGKey(0)
    key, kx = jax.random.split(key)

    B = 8                                             # small batch of CartPole states
    x = jax.random.normal(kx, (B, 4), jnp.float32)

    params = init_params(key)
    packed = pack_params(params)

    actor, critic = actor_critic_forward(x, packed)
    actor = jax.block_until_ready(actor)
    critic = jax.block_until_ready(critic)

    actor_ref, critic_ref = reference_forward(x, params)
    assert actor.shape == (B, 2) and critic.shape == (B, 1)
    # Tolerance reflects bf16 quantization of the parameter slab (f32 accumulation
    # on the MXU); typical error is ~1e-3, bound chosen with comfortable margin.
    assert jnp.allclose(actor, actor_ref, atol=3e-2, rtol=3e-2)
    assert jnp.allclose(critic, critic_ref, atol=3e-2, rtol=3e-2)

    print("KERNEL_OK")
</pallas_src>

<mosaic_0001>
module attributes {stable_mosaic.version = 11 : i64} {
  func.func @_actor_critic_kernel(%arg0: memref<8x4xf32, #tpu.memory_space<vmem>>, %arg1: memref<400x128xbf16, #tpu.memory_space<vmem>>, %arg2: memref<8x128xf32, #tpu.memory_space<vmem>>) attributes {dimension_semantics = [], scalar_prefetch = 0 : i64, scratch_operands = 0 : i64, tpu.core_type = #tpu.core_type<tc>} {
    %c0 = arith.constant 0 : index
    %c0_0 = arith.constant 0 : index
    %0 = vector.load %arg0[%c0, %c0_0] : memref<8x4xf32, #tpu.memory_space<vmem>>, vector<8x4xf32>
    %c0_1 = arith.constant 0 : index
    %c0_2 = arith.constant 0 : index
    %1 = vector.load %arg1[%c0_1, %c0_2] : memref<400x128xbf16, #tpu.memory_space<vmem>>, vector<16x128xbf16>
    %2 = vector.extract_strided_slice %1 {offsets = [0, 0], sizes = [4, 128], strides = [1, 1]} : vector<16x128xbf16> to vector<4x128xbf16>
    %3 = arith.extf %2 : vector<4x128xbf16> to vector<4x128xf32>
    %4 = vector.extract_strided_slice %1 {offsets = [8, 0], sizes = [1, 128], strides = [1, 1]} : vector<16x128xbf16> to vector<1x128xbf16>
    %5 = arith.extf %4 : vector<1x128xbf16> to vector<1x128xf32>
    %6 = vector.extract_strided_slice %1 {offsets = [9, 0], sizes = [1, 128], strides = [1, 1]} : vector<16x128xbf16> to vector<1x128xbf16>
    %7 = arith.extf %6 : vector<1x128xbf16> to vector<1x128xf32>
    %8 = vector.extract_strided_slice %1 {offsets = [10, 0], sizes = [1, 128], strides = [1, 1]} : vector<16x128xbf16> to vector<1x128xbf16>
    %9 = arith.extf %8 : vector<1x128xbf16> to vector<1x128xf32>
    %10 = vector.extract_strided_slice %1 {offsets = [11, 0], sizes = [1, 128], strides = [1, 1]} : vector<16x128xbf16> to vector<1x128xbf16>
    %11 = arith.extf %10 : vector<1x128xbf16> to vector<1x128xf32>
    %c16 = arith.constant 16 : index
    %c0_3 = arith.constant 0 : index
    %12 = vector.load %arg1[%c16, %c0_3] : memref<400x128xbf16, #tpu.memory_space<vmem>>, vector<128x128xbf16>
    %c144 = arith.constant 144 : index
    %c0_4 = arith.constant 0 : index
    %13 = vector.load %arg1[%c144, %c0_4] : memref<400x128xbf16, #tpu.memory_space<vmem>>, vector<128x128xbf16>
    %c272 = arith.constant 272 : index
    %c0_5 = arith.constant 0 : index
    %14 = vector.load %arg1[%c272, %c0_5] : memref<400x128xbf16, #tpu.memory_space<vmem>>, vector<128x128xbf16>
    %15 = vector.extract_strided_slice %0 {offsets = [0, 0], sizes = [8, 1], strides = [1, 1]} : vector<8x4xf32> to vector<8x1xf32>
    %16 = vector.extract_strided_slice %3 {offsets = [0, 0], sizes = [1, 128], strides = [1, 1]} : vector<4x128xf32> to vector<1x128xf32>
    %17 = vector.broadcast %15 : vector<8x1xf32> to vector<8x128xf32>
    %18 = vector.broadcast %16 : vector<1x128xf32> to vector<8x128xf32>
    %19 = arith.mulf %17, %18 : vector<8x128xf32>
    %20 = vector.broadcast %5 : vector<1x128xf32> to vector<8x128xf32>
    %21 = arith.addf %20, %19 : vector<8x128xf32>
    %22 = vector.extract_strided_slice %0 {offsets = [0, 1], sizes = [8, 1], strides = [1, 1]} : vector<8x4xf32> to vector<8x1xf32>
    %23 = vector.extract_strided_slice %3 {offsets = [1, 0], sizes = [1, 128], strides = [1, 1]} : vector<4x128xf32> to vector<1x128xf32>
    %24 = vector.broadcast %22 : vector<8x1xf32> to vector<8x128xf32>
    %25 = vector.broadcast %23 : vector<1x128xf32> to vector<8x128xf32>
    %26 = arith.mulf %24, %25 : vector<8x128xf32>
    %27 = arith.addf %21, %26 : vector<8x128xf32>
    %28 = vector.extract_strided_slice %0 {offsets = [0, 2], sizes = [8, 1], strides = [1, 1]} : vector<8x4xf32> to vector<8x1xf32>
    %29 = vector.extract_strided_slice %3 {offsets = [2, 0], sizes = [1, 128], strides = [1, 1]} : vector<4x128xf32> to vector<1x128xf32>
    %30 = vector.broadcast %28 : vector<8x1xf32> to vector<8x128xf32>
    %31 = vector.broadcast %29 : vector<1x128xf32> to vector<8x128xf32>
    %32 = arith.mulf %30, %31 : vector<8x128xf32>
    %33 = arith.addf %27, %32 : vector<8x128xf32>
    %34 = vector.extract_strided_slice %0 {offsets = [0, 3], sizes = [8, 1], strides = [1, 1]} : vector<8x4xf32> to vector<8x1xf32>
    %35 = vector.extract_strided_slice %3 {offsets = [3, 0], sizes = [1, 128], strides = [1, 1]} : vector<4x128xf32> to vector<1x128xf32>
    %36 = vector.broadcast %34 : vector<8x1xf32> to vector<8x128xf32>
    %37 = vector.broadcast %35 : vector<1x128xf32> to vector<8x128xf32>
    %38 = arith.mulf %36, %37 : vector<8x128xf32>
    %39 = arith.addf %33, %38 : vector<8x128xf32>
    %cst = arith.constant 0.000000e+00 : f32
    %40 = vector.broadcast %cst : f32 to vector<8x128xf32>
    %41 = arith.maximumf %39, %40 : vector<8x128xf32>
    %42 = arith.truncf %41 : vector<8x128xf32> to vector<8x128xbf16>
    %cst_6 = arith.constant dense<0.000000e+00> : vector<8x128xf32>
    %43 = tpu.matmul %42, %12, %cst_6 {dimension_numbers = #tpu.dot_dimension_numbers<[1], [0], [0], [1], [0, 0, 1, 1], [], []>} : vector<8x128xbf16>, vector<128x128xbf16>, vector<8x128xf32> -> vector<8x128xf32>
    %44 = vector.broadcast %7 : vector<1x128xf32> to vector<8x128xf32>
    %45 = arith.addf %43, %44 : vector<8x128xf32>
    %cst_7 = arith.constant 0.000000e+00 : f32
    %46 = vector.broadcast %cst_7 : f32 to vector<8x128xf32>
    %47 = arith.maximumf %45, %46 : vector<8x128xf32>
    %48 = arith.truncf %47 : vector<8x128xf32> to vector<8x128xbf16>
    %cst_8 = arith.constant dense<0.000000e+00> : vector<8x128xf32>
    %49 = tpu.matmul %48, %13, %cst_8 {dimension_numbers = #tpu.dot_dimension_numbers<[1], [0], [0], [1], [0, 0, 1, 1], [], []>} : vector<8x128xbf16>, vector<128x128xbf16>, vector<8x128xf32> -> vector<8x128xf32>
    %50 = vector.broadcast %9 : vector<1x128xf32> to vector<8x128xf32>
    %51 = arith.addf %49, %50 : vector<8x128xf32>
    %52 = tpu.iota {dimensions = array<i32: 1>} : vector<8x128xi32>
    %c2_i32 = arith.constant 2 : i32
    %53 = vector.broadcast %c2_i32 : i32 to vector<8x128xi32>
    %54 = arith.cmpi slt, %52, %53 : vector<8x128xi32>
    %cst_9 = arith.constant 0.000000e+00 : f32
    %55 = vector.broadcast %cst_9 : f32 to vector<8x128xf32>
    %56 = arith.maximumf %51, %55 : vector<8x128xf32>
    %57 = arith.select %54, %51, %56 : vector<8x128xi1>, vector<8x128xf32>
    %cst_10 = arith.constant dense<0xFF800000> : vector<128xf32>
    %58 = vector.multi_reduction <maximumf>, %57, %cst_10 [0] : vector<8x128xf32> to vector<128xf32>
    %59 = vector.shape_cast %58 : vector<128xf32> to vector<1x128xf32>
    %60 = vector.broadcast %59 : vector<1x128xf32> to vector<8x128xf32>
    %61 = arith.subf %57, %60 : vector<8x128xf32>
    %62 = math.exp %61 : vector<8x128xf32>
    %cst_11 = arith.constant dense<0.000000e+00> : vector<128xf32>
    %63 = vector.multi_reduction <add>, %62, %cst_11 [0] : vector<8x128xf32> to vector<128xf32>
    %64 = vector.shape_cast %63 : vector<128xf32> to vector<1x128xf32>
    %65 = math.log %64 : vector<1x128xf32>
    %66 = vector.broadcast %65 : vector<1x128xf32> to vector<8x128xf32>
    %67 = arith.subf %61, %66 : vector<8x128xf32>
    %68 = arith.truncf %57 : vector<8x128xf32> to vector<8x128xbf16>
    %cst_12 = arith.constant dense<0.000000e+00> : vector<8x128xf32>
    %69 = tpu.matmul %68, %14, %cst_12 {dimension_numbers = #tpu.dot_dimension_numbers<[1], [0], [0], [1], [0, 0, 1, 1], [], []>} : vector<8x128xbf16>, vector<128x128xbf16>, vector<8x128xf32> -> vector<8x128xf32>
    %70 = vector.broadcast %11 : vector<1x128xf32> to vector<8x128xf32>
    %71 = arith.addf %69, %70 : vector<8x128xf32>
    %c2_i32_13 = arith.constant 2 : i32
    %72 = vector.broadcast %c2_i32_13 : i32 to vector<8x128xi32>
    %73 = arith.cmpi slt, %52, %72 : vector<8x128xi32>
    %74 = arith.select %73, %67, %71 : vector<8x128xi1>, vector<8x128xf32>
    %c0_14 = arith.constant 0 : index
    %c0_15 = arith.constant 0 : index
    %75 = vector.load %arg2[%c0_14, %c0_15] : memref<8x128xf32, #tpu.memory_space<vmem>>, vector<8x128xf32>
    tpu.vector_store %arg2[%c0_14, %c0_15], %74 {strides = array<i32>} : memref<8x128xf32, #tpu.memory_space<vmem>>, vector<8x128xf32>,
    return
  }
}

</mosaic_0001>

<llo_original>
// kernel: actor_critic_forward.1
$region0: #{actor_critic_forward.1}
  #allocation0 [shape = 'u32[]', space=smem, size = 0x4, offset = 0x4, fixed_abs, tag = 'smem constant byte address 0x4 - core index']
  #allocation1 [shape = 'u32[72,128]{1,0:T(1,128)}', space=vmem, size = 0x9000, scoped, tag = 'internal scratch']
  %s0 = inlined_call_operand.vmem [shape: f32[8,4], index: 0, kind: input, shape index: {}]
  %s1 = inlined_call_operand.hbm [shape: bf16[400,128], index: 1, kind: input, shape index: {}]
  %s2 = inlined_call_operand.vmem [shape: f32[8,128], index: 2, kind: output, shape index: {}]
  %s3 = sld [smem:[#allocation0]]
  $region22: #{actor_critic_forward.1} parent=0
    _
  %s5 = ssub.s32 1, %s3
  %s6 = scalar_select 0, %s5, %s3
  $region1: #{actor_critic_forward.1} parent=0
    #allocation2 [shape = 'u8[102400]{0}', space=vmem, size = 0x19000, scoped, tag = 'input window, operand 1, single buffered']
    #allocation3 [shape = 's32[1]{0}', space=sflag, size = 0x4, scoped, tag = 'scoped memory for actor_critic_forward.1']
    %7 = vsyncpa [#allocation3], 0
    // Predicated region
    $region2: #{actor_critic_forward.1} parent=1 // pred_check
      _
    $region3: #{actor_critic_forward.1} parent=1 // pred_check_branch
      %9 = sbr.rel (0) target = $region5
    $region4: #{actor_critic_forward.1} parent=1 // pred_region
      _
    $region5: #{actor_critic_forward.1} parent=1 // pred_fallthru
      _
    // Predicated region
    $region6: #{actor_critic_forward.1} parent=1 // pred_check
      _
    $region7: #{actor_critic_forward.1} parent=1 // pred_check_branch
      %11 = sbr.rel (0) target = $region9
    $region8: #{actor_critic_forward.1} parent=1 // pred_region
      %13 = vsyncadd [#allocation3], 0
      %s14 = sshll.u32 %s1, 4
      %s15 = int_to_ptr.hbm [resolvable:$true] %s14
      %s16 = sshll.u32 [#allocation2], 4
      %s17 = int_to_ptr.vmem [resolvable:$true] %s16
      %22 = dma.hbm_to_vmem [thread:$0]  %s15, 3200, %s17, [#allocation3], 64, 64, 4
    $region9: #{actor_critic_forward.1} parent=1 // pred_fallthru
      _
    // Predicated region
    $region10: #{actor_critic_forward.1} parent=1 // pred_check
      _
    $region11: #{actor_critic_forward.1} parent=1 // pred_check_branch
      %24 = sbr.rel (0) target = $region13
    $region12: #{actor_critic_forward.1} parent=1 // pred_region
      %26 = dma.done [#allocation3], 3200
    $region13: #{actor_critic_forward.1} parent=1 // pred_fallthru
      _
    %v27 = vld [vmem:[%s0] sm:$0xff]
    %v28 = vld [vmem:[#allocation2] sm:$0xf]
    %v29 = vld [vmem:[#allocation2 + $0x4] sm:$0xf]
    %v30 = vunpack.c.l.bf16 %v28
    %v31 = vunpack.c.l.bf16 %v29
    %v32 = vld [vmem:[#allocation2 + $0x8] sm:$0xf]
    %v33 = vld [vmem:[#allocation2 + $0xc] sm:$0xf]
    %v34 = vld [vmem:[#allocation2 + $0x10] sm:$0xf]
    %v35 = vld [vmem:[#allocation2 + $0x14] sm:$0xf]
    %v36 = vld [vmem:[#allocation2 + $0x18] sm:$0xf]
    %v37 = vld [vmem:[#allocation2 + $0x1c] sm:$0xf]
    %v38 = vld [vmem:[#allocation2 + $0x20] sm:$0xf]
    %v39 = vld [vmem:[#allocation2 + $0x24] sm:$0xf]
    %v40 = vld [vmem:[#allocation2 + $0x28] sm:$0xf]
    %v41 = vld [vmem:[#allocation2 + $0x2c] sm:$0xf]
    %v42 = vld [vmem:[#allocation2 + $0x30] sm:$0xf]
    %v43 = vld [vmem:[#allocation2 + $0x34] sm:$0xf]
    %v44 = vld [vmem:[#allocation2 + $0x38] sm:$0xf]
    %v45 = vld [vmem:[#allocation2 + $0x3c] sm:$0xf]
    %v46 = vld [vmem:[#allocation2 + $0x40] sm:$0xf]
    %v47 = vld [vmem:[#allocation2 + $0x44] sm:$0xf]
    %v48 = vld [vmem:[#allocation2 + $0x48] sm:$0xf]
    %v49 = vld [vmem:[#allocation2 + $0x4c] sm:$0xf]
    %v50 = vld [vmem:[#allocation2 + $0x50] sm:$0xf]
    %v51 = vld [vmem:[#allocation2 + $0x54] sm:$0xf]
    %v52 = vld [vmem:[#allocation2 + $0x58] sm:$0xf]
    %v53 = vld [vmem:[#allocation2 + $0x5c] sm:$0xf]
    %v54 = vld [vmem:[#allocation2 + $0x60] sm:$0xf]
    %v55 = vld [vmem:[#allocation2 + $0x64] sm:$0xf]
    %v56 = vld [vmem:[#allocation2 + $0x68] sm:$0xf]
    %v57 = vld [vmem:[#allocation2 + $0x6c] sm:$0xf]
    %v58 = vld [vmem:[#allocation2 + $0x70] sm:$0xf]
    %v59 = vld [vmem:[#allocation2 + $0x74] sm:$0xf]
    %v60 = vld [vmem:[#allocation2 + $0x78] sm:$0xf]
    %v61 = vld [vmem:[#allocation2 + $0x7c] sm:$0xf]
    %v62 = vld [vmem:[#allocation2 + $0x80] sm:$0xf]
    %v63 = vld [vmem:[#allocation2 + $0x84] sm:$0xf]
    %v64 = vld [vmem:[#allocation2 + $0x88] sm:$0xf]
    %v65 = vld [vmem:[#allocation2 + $0x8c] sm:$0xf]
    %v66 = vld [vmem:[#allocation2 + $0x90] sm:$0xf]
    %v67 = vld [vmem:[#allocation2 + $0x94] sm:$0xf]
    %v68 = vld [vmem:[#allocation2 + $0x98] sm:$0xf]
    %v69 = vld [vmem:[#allocation2 + $0x9c] sm:$0xf]
    %v70 = vld [vmem:[#allocation2 + $0xa0] sm:$0xf]
    %v71 = vld [vmem:[#allocation2 + $0xa4] sm:$0xf]
    %v72 = vld [vmem:[#allocation2 + $0xa8] sm:$0xf]
    %v73 = vld [vmem:[#allocation2 + $0xac] sm:$0xf]
    %v74 = vld [vmem:[#allocation2 + $0xb0] sm:$0xf]
    %v75 = vld [vmem:[#allocation2 + $0xb4] sm:$0xf]
    %v76 = vld [vmem:[#allocation2 + $0xb8] sm:$0xf]
    %v77 = vld [vmem:[#allocation2 + $0xbc] sm:$0xf]
    %v78 = vld [vmem:[#allocation2 + $0xc0] sm:$0xf]
    %v79 = vld [vmem:[#allocation2 + $0xc4] sm:$0xf]
    %81 = vset.pattern.permute.xlu0 0
    %82 = vperm.xlu0 %81, %v27
    %v83 = vpop.permute.xlu0 %82
    %v85 = vperm.slane %v30, 0
    %v86 = vmul.f32 %v83, %v85
    %v87 = vperm.slane %v31, 0
    %v88 = vadd.f32 %v87, %v86
    %89 = vset.pattern.permute.xlu0 1
    %90 = vperm.xlu0 %89, %v27
    %v91 = vpop.permute.xlu0 %90
    %v93 = vperm.slane %v30, 1
    %v94 = vmul.f32 %v91, %v93
    %v95 = vadd.f32 %v88, %v94
    %96 = vset.pattern.permute.xlu0 2
    %97 = vperm.xlu0 %96, %v27
    %v98 = vpop.permute.xlu0 %97
    %v100 = vperm.slane %v30, 2
    %v101 = vmul.f32 %v98, %v100
    %v102 = vadd.f32 %v95, %v101
    %103 = vset.pattern.permute.xlu0 3
    %104 = vperm.xlu0 %103, %v27
    %v105 = vpop.permute.xlu0 %104
    %v107 = vperm.slane %v30, 3
    %v108 = vmul.f32 %v105, %v107
    %v109 = vadd.f32 %v102, %v108
    %v110 = vmax.f32 %v109, 0.0
    %v111 = vpack.c.bf16 %v110, %v110
    %v112 = vperm.slane %v31, 1
    %v129 = vunpack.c.l.b16 %v32
    %v130 = vunpack.c.l.b16 %v33
    %v131 = vunpack.c.l.b16 %v34
    %v132 = vunpack.c.l.b16 %v35
    %v133 = vunpack.c.l.b16 %v36
    %v134 = vunpack.c.l.b16 %v37
    %v135 = vunpack.c.l.b16 %v38
    %v136 = vunpack.c.l.b16 %v39
    %v137 = vunpack.c.l.b16 %v40
    %v138 = vunpack.c.l.b16 %v41
    %v139 = vunpack.c.l.b16 %v42
    %v140 = vunpack.c.l.b16 %v43
    %v141 = vunpack.c.l.b16 %v44
    %v142 = vunpack.c.l.b16 %v45
    %v143 = vunpack.c.l.b16 %v46
    %v144 = vunpack.c.l.b16 %v47
    %v145 = vpack.c.b16 %v130, %v129
    %v146 = vpack.c.b16 %v132, %v131
    %v147 = vpack.c.b16 %v134, %v133
    %v148 = vpack.c.b16 %v136, %v135
    %v149 = vpack.c.b16 %v138, %v137
    %v150 = vpack.c.b16 %v140, %v139
    %v151 = vpack.c.b16 %v142, %v141
    %v152 = vpack.c.b16 %v144, %v143
    %161 = vmatpush.bf16.msra.mxu0 %v152
    %162 = vmatpush.bf16.msra.mxu0 %v151
    %163 = vmatpush.bf16.msra.mxu0 %v150
    %164 = vmatpush.bf16.msra.mxu0 %v149
    %165 = vmatpush.bf16.msra.mxu0 %v148
    %166 = vmatpush.bf16.msra.mxu0 %v147
    %167 = vmatpush.bf16.msra.mxu0 %v146
    %168 = vmatpush.bf16.msra.mxu0 %v145
    %169 = vmatmul.bf16.gmra.mxu0 %v111
    %v170 = vpop.f32.mrf.mxu0
    %v171 = vadd.f32 %v112, %v170
    %v172 = vpop.f32.mrf.mxu0
    %173 = vdwg.mxu0
    %v174 = vmax.f32 %v171, 0.0
    %v175 = vpack.c.bf16 %v174, %v174
    %v176 = vperm.slane %v31, 2
    %v193 = vunpack.c.l.b16 %v48
    %v194 = vunpack.c.l.b16 %v49
    %v195 = vunpack.c.l.b16 %v50
    %v196 = vunpack.c.l.b16 %v51
    %v197 = vunpack.c.l.b16 %v52
    %v198 = vunpack.c.l.b16 %v53
    %v199 = vunpack.c.l.b16 %v54
    %v200 = vunpack.c.l.b16 %v55
    %v201 = vunpack.c.l.b16 %v56
    %v202 = vunpack.c.l.b16 %v57
    %v203 = vunpack.c.l.b16 %v58
    %v204 = vunpack.c.l.b16 %v59
    %v205 = vunpack.c.l.b16 %v60
    %v206 = vunpack.c.l.b16 %v61
    %v207 = vunpack.c.l.b16 %v62
    %v208 = vunpack.c.l.b16 %v63
    %v209 = vpack.c.b16 %v194, %v193
    %v210 = vpack.c.b16 %v196, %v195
    %v211 = vpack.c.b16 %v198, %v197
    %v212 = vpack.c.b16 %v200, %v199
    %v213 = vpack.c.b16 %v202, %v201
    %v214 = vpack.c.b16 %v204, %v203
    %v215 = vpack.c.b16 %v206, %v205
    %v216 = vpack.c.b16 %v208, %v207
    %225 = vmatpush.bf16.msra.mxu0 %v216
    %226 = vmatpush.bf16.msra.mxu0 %v215
    %227 = vmatpush.bf16.msra.mxu0 %v214
    %228 = vmatpush.bf16.msra.mxu0 %v213
    %229 = vmatpush.bf16.msra.mxu0 %v212
    %230 = vmatpush.bf16.msra.mxu0 %v211
    %231 = vmatpush.bf16.msra.mxu0 %v210
    %232 = vmatpush.bf16.msra.mxu0 %v209
    %233 = vmatmul.bf16.gmra.mxu0 %v175
    %v234 = vpop.f32.mrf.mxu0
    %v235 = vadd.f32 %v176, %v234
    %v236 = vpop.f32.mrf.mxu0
    %237 = vdwg.mxu0
    %v238 = vlaneseq
    %v239 = vand.u32 %v238, 127
    %vm240 = vcmp.lt.s32.totalorder %v239, 2
    %v241 = vmax.f32 %v235, 0.0
    %v242 = vsel %vm240, %v235, %v241
    %v243 = vrot.slane %v242, 4
    %v244 = vmax.f32 %v242, %v243
    %v245 = vrot.slane %v244, 2
    %v246 = vmax.f32 %v244, %v245
    %v247 = vrot.slane %v246, 1
    %v248 = vmax.f32 %v246, %v247
    %v249 = vsub.f32 %v242, %v248
    %v250 = vmul.f32 %v249, 1.442695
    %v251 = vpow.pop %v250
    %v252 = vrot.slane %v251, 4
    %v253 = vadd.f32 %v251, %v252
    %v254 = vrot.slane %v253, 2
    %v255 = vadd.f32 %v253, %v254
    %v256 = vrot.slane %v255, 1
    %v257 = vadd.f32 %v255, %v256
    %v258 = vlog2.pop %v257
    %v259 = vmul.f32 %v258, 0.6931472
    %v260 = vsub.f32 %v249, %v259
    %v261 = vpack.c.bf16 %v242, %v242
    %v262 = vperm.slane %v31, 3
    %v279 = vunpack.c.l.b16 %v64
    %v280 = vunpack.c.l.b16 %v65
    %v281 = vunpack.c.l.b16 %v66
    %v282 = vunpack.c.l.b16 %v67
    %v283 = vunpack.c.l.b16 %v68
    %v284 = vunpack.c.l.b16 %v69
    %v285 = vunpack.c.l.b16 %v70
    %v286 = vunpack.c.l.b16 %v71
    %v287 = vunpack.c.l.b16 %v72
    %v288 = vunpack.c.l.b16 %v73
    %v289 = vunpack.c.l.b16 %v74
    %v290 = vunpack.c.l.b16 %v75
    %v291 = vunpack.c.l.b16 %v76
    %v292 = vunpack.c.l.b16 %v77
    %v293 = vunpack.c.l.b16 %v78
    %v294 = vunpack.c.l.b16 %v79
    %v295 = vpack.c.b16 %v280, %v279
    %v296 = vpack.c.b16 %v282, %v281
    %v297 = vpack.c.b16 %v284, %v283
    %v298 = vpack.c.b16 %v286, %v285
    %v299 = vpack.c.b16 %v288, %v287
    %v300 = vpack.c.b16 %v290, %v289
    %v301 = vpack.c.b16 %v292, %v291
    %v302 = vpack.c.b16 %v294, %v293
    %311 = vmatpush.bf16.msra.mxu0 %v302
    %312 = vmatpush.bf16.msra.mxu0 %v301
    %313 = vmatpush.bf16.msra.mxu0 %v300
    %314 = vmatpush.bf16.msra.mxu0 %v299
    %315 = vmatpush.bf16.msra.mxu0 %v298
    %316 = vmatpush.bf16.msra.mxu0 %v297
    %317 = vmatpush.bf16.msra.mxu0 %v296
    %318 = vmatpush.bf16.msra.mxu0 %v295
    %319 = vmatmul.bf16.gmra.mxu0 %v261
    %v320 = vpop.f32.mrf.mxu0
    %v321 = vadd.f32 %v262, %v320
    %v322 = vpop.f32.mrf.mxu0
    %323 = vdwg.mxu0
    %v324 = vsel %vm240, %v260, %v321
    %325 = vst [vmem:[%s2] sm:$0xff] %v324
    // Predicated region
    $region14: #{actor_critic_forward.1} parent=1 // pred_check
      _
    $region15: #{actor_critic_forward.1} parent=1 // pred_check_branch
      %327 = sbr.rel (0) target = $region17
    $region16: #{actor_critic_forward.1} parent=1 // pred_region
      _
    $region17: #{actor_critic_forward.1} parent=1 // pred_fallthru
      _
    // Predicated region
    $region18: #{actor_critic_forward.1} parent=1 // pred_check
      _
    $region19: #{actor_critic_forward.1} parent=1 // pred_check_branch
      %329 = sbr.rel (0) target = $region21
    $region20: #{actor_critic_forward.1} parent=1 // pred_region
      _
    $region21: #{actor_critic_forward.1} parent=1 // pred_fallthru
      _
    %330 = vsyncpa [#allocation3], 1

</llo_original>
